<compile_context>
chip_gen: v7x
topology: tpu7x:2x2x1
jax: 0.10.0
libtpu: 0.0.40
codegen_flags: <defaults>
</compile_context>

<pallas_src>
import math
from functools import partial

import jax
import jax.numpy as jnp
from jax.experimental import pallas as pl
from jax.experimental.pallas import tpu as pltpu


def _ffn_kernel(x_ref, g_ref, b_ref, w1_ref, b1_ref, w2_ref, b2_ref, o_ref,
                *, eps):
    """Fused LayerNorm -> Linear -> GELU -> Linear on one row tile.

    x_ref:  (tm, dim)      input tile
    g_ref:  (1, dim)       LayerNorm gamma
    b_ref:  (1, dim)       LayerNorm beta
    w1_ref: (dim, hidden)  first linear weight
    b1_ref: (1, hidden)    first linear bias
    w2_ref: (hidden, dim)  second linear weight
    b2_ref: (1, dim)       second linear bias
    o_ref:  (tm, dim)      output tile
    """
    x = x_ref[...].astype(jnp.float32)                       # (tm, dim)

    # --- LayerNorm (f32) ---
    mean = jnp.mean(x, axis=-1, keepdims=True)
    xc = x - mean
    var = jnp.mean(xc * xc, axis=-1, keepdims=True)
    inv = jax.lax.rsqrt(var + jnp.float32(eps))
    xn = xc * inv
    xn = xn * g_ref[...].astype(jnp.float32) + b_ref[...].astype(jnp.float32)

    # --- Linear1 + GELU (MXU matmul, f32 accumulate) ---
    h = jnp.dot(xn.astype(w1_ref.dtype), w1_ref[...],
                preferred_element_type=jnp.float32)           # (tm, hidden)
    h = h + b1_ref[...].astype(jnp.float32)
    # tanh-approximate GELU (== nn.GELU(approximate='tanh')); tanh runs on EUP.
    h = jax.nn.gelu(h, approximate=True)

    # --- Linear2 (MXU matmul, f32 accumulate) ---
    y = jnp.dot(h.astype(w2_ref.dtype), w2_ref[...],
                preferred_element_type=jnp.float32)           # (tm, dim)
    y = y + b2_ref[...].astype(jnp.float32)

    # Single lane-dense full-width store; cast only here.
    o_ref[...] = y.astype(o_ref.dtype)


def feed_forward(x, gamma, beta, w1, b1, w2, b2, *, eps: float = 1e-5,
                 row_tile: int | None = None):
    """JAX/Pallas equivalent of FeedForward.forward (LN -> Linear -> GELU -> Linear)."""
    orig_shape = x.shape
    dim = x.shape[-1]
    hidden = w1.shape[-1]
    assert w1.shape == (dim, hidden), w1.shape
    assert w2.shape == (hidden, dim), w2.shape

    m = math.prod(orig_shape[:-1])
    x2 = x.reshape(m, dim)

    # Row tile: one big block for small inputs (no grid overhead on 1-TC
    # chips); a multiple-of-8 tile + parallel grid for large inputs (megacore
    # on v7x, bounded VMEM footprint everywhere).
    if row_tile is None:
        row_tile = m if m <= 512 else 512
    tm = min(row_tile, m)
    grid = (pl.cdiv(m, tm),)

    g2 = gamma.reshape(1, dim)
    be2 = beta.reshape(1, dim)
    b1_2 = b1.reshape(1, hidden)
    b2_2 = b2.reshape(1, dim)

    kernel = partial(_ffn_kernel, eps=eps)

    itemsize = jnp.dtype(x.dtype).itemsize
    w_itemsize = jnp.dtype(w1.dtype).itemsize
    cost = pl.CostEstimate(
        flops=4 * m * dim * hidden,                 # two (m,dim,hidden) matmuls
        transcendentals=m * hidden + m,             # gelu tanh + rsqrt
        bytes_accessed=2 * m * dim * itemsize + 2 * dim * hidden * w_itemsize,
    )

    out = pl.pallas_call(
        kernel,
        out_shape=jax.ShapeDtypeStruct((m, dim), x.dtype),
        grid=grid,
        in_specs=[
            pl.BlockSpec((tm, dim), lambda i: (i, 0)),        # x tile
            pl.BlockSpec((1, dim), lambda i: (0, 0)),         # gamma
            pl.BlockSpec((1, dim), lambda i: (0, 0)),         # beta
            pl.BlockSpec((dim, hidden), lambda i: (0, 0)),    # w1 (resident)
            pl.BlockSpec((1, hidden), lambda i: (0, 0)),      # b1
            pl.BlockSpec((hidden, dim), lambda i: (0, 0)),    # w2 (resident)
            pl.BlockSpec((1, dim), lambda i: (0, 0)),         # b2
        ],
        out_specs=pl.BlockSpec((tm, dim), lambda i: (i, 0)),
        compiler_params=pltpu.CompilerParams(
            dimension_semantics=("parallel",),
            vmem_limit_bytes=64 * 1024 * 1024,
        ),
        cost_estimate=cost,
    )(x2, g2, be2, w1, b1_2, w2, b2_2)

    return out.reshape(orig_shape)


def _reference(x, gamma, beta, w1, b1, w2, b2, eps: float = 1e-5):
    """Pure-JAX reference mirroring the PyTorch module (LN -> Linear -> GELU -> Linear)."""
    xf = x.astype(jnp.float32)
    mean = xf.mean(axis=-1, keepdims=True)
    var = ((xf - mean) ** 2).mean(axis=-1, keepdims=True)
    xn = (xf - mean) * jax.lax.rsqrt(var + eps)
    xn = xn * gamma.astype(jnp.float32) + beta.astype(jnp.float32)
    h = xn @ w1.astype(jnp.float32) + b1.astype(jnp.float32)
    h = jax.nn.gelu(h, approximate=True)
    y = h @ w2.astype(jnp.float32) + b2.astype(jnp.float32)
    return y.astype(x.dtype)


if __name__ == "__main__":
    key = jax.random.PRNGKey(0)
    batch, seq, dim, hidden = 2, 8, 32, 64
    ks = jax.random.split(key, 7)

    x = jax.random.normal(ks[0], (batch, seq, dim), dtype=jnp.float32)
    gamma = 1.0 + 0.1 * jax.random.normal(ks[1], (dim,), dtype=jnp.float32)
    beta = 0.1 * jax.random.normal(ks[2], (dim,), dtype=jnp.float32)
    w1 = jax.random.normal(ks[3], (dim, hidden), dtype=jnp.float32) / math.sqrt(dim)
    b1 = 0.01 * jax.random.normal(ks[4], (hidden,), dtype=jnp.float32)
    w2 = jax.random.normal(ks[5], (hidden, dim), dtype=jnp.float32) / math.sqrt(hidden)
    b2 = 0.01 * jax.random.normal(ks[6], (dim,), dtype=jnp.float32)

    out = feed_forward(x, gamma, beta, w1, b1, w2, b2)
    out = jax.block_until_ready(out)

    ref = _reference(x, gamma, beta, w1, b1, w2, b2)
    assert out.shape == x.shape, out.shape
    assert out.dtype == x.dtype, out.dtype
    max_err = float(jnp.max(jnp.abs(out - ref)))
    assert jnp.allclose(out, ref, atol=1e-3, rtol=1e-3), max_err
    print("KERNEL_OK")
</pallas_src>

<mosaic_0001>
module attributes {stable_mosaic.version = 11 : i64} {
  func.func @_ffn_kernel(%arg0: i32, %arg1: memref<16x32xf32, #tpu.memory_space<vmem>>, %arg2: memref<1x32xf32, #tpu.memory_space<vmem>>, %arg3: memref<1x32xf32, #tpu.memory_space<vmem>>, %arg4: memref<32x64xf32, #tpu.memory_space<vmem>>, %arg5: memref<1x64xf32, #tpu.memory_space<vmem>>, %arg6: memref<64x32xf32, #tpu.memory_space<vmem>>, %arg7: memref<1x32xf32, #tpu.memory_space<vmem>>, %arg8: memref<16x32xf32, #tpu.memory_space<vmem>>) attributes {dimension_semantics = [#tpu.dimension_semantics<parallel>], iteration_bounds = array<i64: 1>, scalar_prefetch = 0 : i64, scratch_operands = 0 : i64, tpu.core_type = #tpu.core_type<tc>, window_params = [{transform_indices = @transform_0, window_bounds = array<i64: 16, 32>}, {pipeline_mode = #tpu.pipeline_mode<synchronous>, transform_indices = @transform_1, window_bounds = array<i64: 1, 32>}, {pipeline_mode = #tpu.pipeline_mode<synchronous>, transform_indices = @transform_2, window_bounds = array<i64: 1, 32>}, {pipeline_mode = #tpu.pipeline_mode<synchronous>, transform_indices = @transform_3, window_bounds = array<i64: 32, 64>}, {pipeline_mode = #tpu.pipeline_mode<synchronous>, transform_indices = @transform_4, window_bounds = array<i64: 1, 64>}, {pipeline_mode = #tpu.pipeline_mode<synchronous>, transform_indices = @transform_5, window_bounds = array<i64: 64, 32>}, {pipeline_mode = #tpu.pipeline_mode<synchronous>, transform_indices = @transform_6, window_bounds = array<i64: 1, 32>}, {transform_indices = @transform_7, window_bounds = array<i64: 16, 32>}]} {
    %c0 = arith.constant 0 : index
    %c0_0 = arith.constant 0 : index
    %0 = vector.load %arg1[%c0, %c0_0] : memref<16x32xf32, #tpu.memory_space<vmem>>, vector<16x32xf32>
    %cst = arith.constant dense<0.000000e+00> : vector<16xf32>
    %1 = vector.multi_reduction <add>, %0, %cst [1] : vector<16x32xf32> to vector<16xf32>
    %2 = vector.shape_cast %1 : vector<16xf32> to vector<16x1xf32>
    %cst_1 = arith.constant 3.200000e+01 : f32
    %3 = vector.broadcast %cst_1 : f32 to vector<16x1xf32>
    %4 = arith.divf %2, %3 : vector<16x1xf32>
    %5 = vector.broadcast %4 : vector<16x1xf32> to vector<16x32xf32>
    %6 = arith.subf %0, %5 : vector<16x32xf32>
    %7 = arith.mulf %6, %6 : vector<16x32xf32>
    %cst_2 = arith.constant dense<0.000000e+00> : vector<16xf32>
    %8 = vector.multi_reduction <add>, %7, %cst_2 [1] : vector<16x32xf32> to vector<16xf32>
    %9 = vector.shape_cast %8 : vector<16xf32> to vector<16x1xf32>
    %cst_3 = arith.constant 3.200000e+01 : f32
    %10 = vector.broadcast %cst_3 : f32 to vector<16x1xf32>
    %11 = arith.divf %9, %10 : vector<16x1xf32>
    %cst_4 = arith.constant 9.99999974E-6 : f32
    %12 = vector.broadcast %cst_4 : f32 to vector<16x1xf32>
    %13 = arith.addf %11, %12 : vector<16x1xf32>
    %14 = math.rsqrt %13 : vector<16x1xf32>
    %15 = vector.broadcast %14 : vector<16x1xf32> to vector<16x32xf32>
    %16 = arith.mulf %6, %15 : vector<16x32xf32>
    %c0_5 = arith.constant 0 : index
    %c0_6 = arith.constant 0 : index
    %17 = vector.load %arg2[%c0_5, %c0_6] : memref<1x32xf32, #tpu.memory_space<vmem>>, vector<1x32xf32>
    %18 = vector.broadcast %17 : vector<1x32xf32> to vector<16x32xf32>
    %19 = arith.mulf %16, %18 : vector<16x32xf32>
    %c0_7 = arith.constant 0 : index
    %c0_8 = arith.constant 0 : index
    %20 = vector.load %arg3[%c0_7, %c0_8] : memref<1x32xf32, #tpu.memory_space<vmem>>, vector<1x32xf32>
    %21 = vector.broadcast %20 : vector<1x32xf32> to vector<16x32xf32>
    %22 = arith.addf %19, %21 : vector<16x32xf32>
    %c0_9 = arith.constant 0 : index
    %c0_10 = arith.constant 0 : index
    %23 = vector.load %arg4[%c0_9, %c0_10] : memref<32x64xf32, #tpu.memory_space<vmem>>, vector<32x64xf32>
    %cst_11 = arith.constant dense<0.000000e+00> : vector<16x64xf32>
    %24 = tpu.matmul %22, %23, %cst_11 {dimension_numbers = #tpu.dot_dimension_numbers<[1], [0], [0], [1], [0, 0, 1, 1], [], []>} : vector<16x32xf32>, vector<32x64xf32>, vector<16x64xf32> -> vector<16x64xf32>
    %c0_12 = arith.constant 0 : index
    %c0_13 = arith.constant 0 : index
    %25 = vector.load %arg5[%c0_12, %c0_13] : memref<1x64xf32, #tpu.memory_space<vmem>>, vector<1x64xf32>
    %26 = vector.broadcast %25 : vector<1x64xf32> to vector<16x64xf32>
    %27 = arith.addf %24, %26 : vector<16x64xf32>
    %28 = arith.mulf %27, %27 : vector<16x64xf32>
    %29 = arith.mulf %27, %28 : vector<16x64xf32>
    %cst_14 = arith.constant 4.471500e-02 : f32
    %30 = vector.broadcast %cst_14 : f32 to vector<16x64xf32>
    %31 = arith.mulf %30, %29 : vector<16x64xf32>
    %32 = arith.addf %27, %31 : vector<16x64xf32>
    %cst_15 = arith.constant 0.797884583 : f32
    %33 = vector.broadcast %cst_15 : f32 to vector<16x64xf32>
    %34 = arith.mulf %33, %32 : vector<16x64xf32>
    %35 = math.tanh %34 : vector<16x64xf32>
    %cst_16 = arith.constant 1.000000e+00 : f32
    %36 = vector.broadcast %cst_16 : f32 to vector<16x64xf32>
    %37 = arith.addf %36, %35 : vector<16x64xf32>
    %cst_17 = arith.constant 5.000000e-01 : f32
    %38 = vector.broadcast %cst_17 : f32 to vector<16x64xf32>
    %39 = arith.mulf %38, %37 : vector<16x64xf32>
    %40 = arith.mulf %27, %39 : vector<16x64xf32>
    %c0_18 = arith.constant 0 : index
    %c0_19 = arith.constant 0 : index
    %41 = vector.load %arg6[%c0_18, %c0_19] : memref<64x32xf32, #tpu.memory_space<vmem>>, vector<64x32xf32>
    %cst_20 = arith.constant dense<0.000000e+00> : vector<16x32xf32>
    %42 = tpu.matmul %40, %41, %cst_20 {dimension_numbers = #tpu.dot_dimension_numbers<[1], [0], [0], [1], [0, 0, 1, 1], [], []>} : vector<16x64xf32>, vector<64x32xf32>, vector<16x32xf32> -> vector<16x32xf32>
    %c0_21 = arith.constant 0 : index
    %c0_22 = arith.constant 0 : index
    %43 = vector.load %arg7[%c0_21, %c0_22] : memref<1x32xf32, #tpu.memory_space<vmem>>, vector<1x32xf32>
    %44 = vector.broadcast %43 : vector<1x32xf32> to vector<16x32xf32>
    %45 = arith.addf %42, %44 : vector<16x32xf32>
    %c0_23 = arith.constant 0 : index
    %c0_24 = arith.constant 0 : index
    %46 = vector.load %arg8[%c0_23, %c0_24] : memref<16x32xf32, #tpu.memory_space<vmem>>, vector<16x32xf32>
    tpu.vector_store %arg8[%c0_23, %c0_24], %45 {strides = array<i32>} : memref<16x32xf32, #tpu.memory_space<vmem>>, vector<16x32xf32>,
    return
  }
  func.func @transform_0(%arg0: i32) -> (i32, i32) {
    %c0_i32 = arith.constant 0 : i32
    %c0_i32_0 = arith.constant 0 : i32
    return %arg0, %c0_i32 : i32, i32
  }
  func.func @transform_1(%arg0: i32) -> (i32, i32) {
    %c0_i32 = arith.constant 0 : i32
    %c0_i32_0 = arith.constant 0 : i32
    %c0_i32_1 = arith.constant 0 : i32
    return %c0_i32, %c0_i32_0 : i32, i32
  }
  func.func @transform_2(%arg0: i32) -> (i32, i32) {
    %c0_i32 = arith.constant 0 : i32
    %c0_i32_0 = arith.constant 0 : i32
    %c0_i32_1 = arith.constant 0 : i32
    return %c0_i32, %c0_i32_0 : i32, i32
  }
  func.func @transform_3(%arg0: i32) -> (i32, i32) {
    %c0_i32 = arith.constant 0 : i32
    %c0_i32_0 = arith.constant 0 : i32
    %c0_i32_1 = arith.constant 0 : i32
    return %c0_i32, %c0_i32_0 : i32, i32
  }
  func.func @transform_4(%arg0: i32) -> (i32, i32) {
    %c0_i32 = arith.constant 0 : i32
    %c0_i32_0 = arith.constant 0 : i32
    %c0_i32_1 = arith.constant 0 : i32
    return %c0_i32, %c0_i32_0 : i32, i32
  }
  func.func @transform_5(%arg0: i32) -> (i32, i32) {
    %c0_i32 = arith.constant 0 : i32
    %c0_i32_0 = arith.constant 0 : i32
    %c0_i32_1 = arith.constant 0 : i32
    return %c0_i32, %c0_i32_0 : i32, i32
  }
  func.func @transform_6(%arg0: i32) -> (i32, i32) {
    %c0_i32 = arith.constant 0 : i32
    %c0_i32_0 = arith.constant 0 : i32
    %c0_i32_1 = arith.constant 0 : i32
    return %c0_i32, %c0_i32_0 : i32, i32
  }
  func.func @transform_7(%arg0: i32) -> (i32, i32) {
    %c0_i32 = arith.constant 0 : i32
    %c0_i32_0 = arith.constant 0 : i32
    return %arg0, %c0_i32 : i32, i32
  }
}

</mosaic_0001>

<llo_original>
// kernel: tpu_custom_call.1
$region0: #{tpu_custom_call.1}
  #allocation0 [shape = 'u32[]', space=smem, size = 0x4, offset = 0x4, fixed_abs, tag = 'smem constant byte address 0x4 - core index']
  #allocation1 [shape = 'u32[144,128]{1,0:T(1,128)}', space=vmem, size = 0x12000, scoped, tag = 'internal scratch']
  %s0 = inlined_call_operand.hbm [shape: f32[16,32], index: 0, kind: input, shape index: {}]
  %s1 = inlined_call_operand.hbm [shape: f32[1,32], index: 1, kind: input, shape index: {}]
  %s2 = inlined_call_operand.hbm [shape: f32[1,32], index: 2, kind: input, shape index: {}]
  %s3 = inlined_call_operand.hbm [shape: f32[32,64], index: 3, kind: input, shape index: {}]
  %s4 = inlined_call_operand.hbm [shape: f32[1,64], index: 4, kind: input, shape index: {}]
  %s5 = inlined_call_operand.hbm [shape: f32[64,32], index: 5, kind: input, shape index: {}]
  %s6 = inlined_call_operand.hbm [shape: f32[1,32], index: 6, kind: input, shape index: {}]
  %s7 = inlined_call_operand.hbm [shape: f32[16,32], index: 7, kind: output, shape index: {}]
  %s8 = sld [smem:[#allocation0]]
  $region66: #{tpu_custom_call.1} parent=0
    _
  %s10 = ssub.s32 1, %s8
  %s11 = scalar_select 0, %s10, %s8
  $region1: #{tpu_custom_call.1} parent=0
    #allocation2 [shape = 'u8[8192]{0}', space=vmem, size = 0x2000, scoped, tag = 'input window, operand 0, single buffered']
    #allocation3 [shape = 's32[1]{0}', space=sflag, size = 0x4, scoped, tag = 'scoped memory for tpu_custom_call.1']
    #allocation4 [shape = 's32[1]{0}', space=sflag, size = 0x4, scoped, tag = 'scoped memory for tpu_custom_call.1']
    #allocation5 [shape = 'u8[512]{0}', space=vmem, size = 0x400, scoped, tag = 'input window, operand 1, single buffered']
    #allocation6 [shape = 's32[1]{0}', space=sflag, size = 0x4, scoped, tag = 'scoped memory for tpu_custom_call.1']
    #allocation7 [shape = 'u8[512]{0}', space=vmem, size = 0x400, scoped, tag = 'input window, operand 2, single buffered']
    #allocation8 [shape = 'u8[16384]{0}', space=vmem, size = 0x4000, scoped, tag = 'input window, operand 3, single buffered']
    #allocation9 [shape = 's32[1]{0}', space=sflag, size = 0x4, scoped, tag = 'scoped memory for tpu_custom_call.1']
    #allocation10 [shape = 'u8[512]{0}', space=vmem, size = 0x400, scoped, tag = 'input window, operand 4, single buffered']
    #allocation11 [shape = 'u8[32768]{0}', space=vmem, size = 0x8000, scoped, tag = 'input window, operand 5, single buffered']
    #allocation12 [shape = 's32[1]{0}', space=sflag, size = 0x4, scoped, tag = 'scoped memory for tpu_custom_call.1']
    #allocation13 [shape = 'u8[512]{0}', space=vmem, size = 0x400, scoped, tag = 'input window, operand 6, single buffered']
    #allocation14 [shape = 'u8[8192]{0}', space=vmem, size = 0x2000, scoped, tag = 'output window, operand 0, single buffered']
    %12 = vsyncpa [#allocation3], 0
    %13 = vsyncpa [#allocation6], 0
    %14 = vsyncpa [#allocation9], 0
    %15 = vsyncpa [#allocation12], 0
    %16 = vsyncpa [#allocation4], 0
    // Predicated region
    $region2: #{tpu_custom_call.1} parent=1 // pred_check
      _
    $region3: #{tpu_custom_call.1} parent=1 // pred_check_branch
      %18 = sbr.rel (0) target = $region5
    $region4: #{tpu_custom_call.1} parent=1 // pred_region
      %s20 = ssub.s32 256, 256
      %21 = vsyncadd [#allocation3], %s20
      %s22 = sshll.u32 [#allocation2], 4
      %s23 = int_to_ptr.vmem [resolvable:$true] %s22
      %28 = dma.hbm_to_vmem [thread:$0]  %s0, 256, %s23, [#allocation3], 128, 128, 8
    $region5: #{tpu_custom_call.1} parent=1 // pred_fallthru
      _
    // Predicated region
    $region6: #{tpu_custom_call.1} parent=1 // pred_check
      _
    $region7: #{tpu_custom_call.1} parent=1 // pred_check_branch
      %30 = sbr.rel (0) target = $region9
    $region8: #{tpu_custom_call.1} parent=1 // pred_region
      %s32 = ssub.s32 16, 16
      %33 = vsyncadd [#allocation6], %s32
      %s35 = sshll.u32 [#allocation5], 4
      %s36 = int_to_ptr.vmem [resolvable:$true] %s35
      %38 = dma.hbm_to_vmem [thread:$0]  %s1, 16, %s36, [#allocation6]
    $region9: #{tpu_custom_call.1} parent=1 // pred_fallthru
      _
    // Predicated region
    $region10: #{tpu_custom_call.1} parent=1 // pred_check
      _
    $region11: #{tpu_custom_call.1} parent=1 // pred_check_branch
      %40 = sbr.rel (0) target = $region13
    $region12: #{tpu_custom_call.1} parent=1 // pred_region
      %s42 = ssub.s32 16, 16
      %43 = vsyncadd [#allocation6], %s42
      %s45 = sshll.u32 [#allocation7], 4
      %s46 = int_to_ptr.vmem [resolvable:$true] %s45
      %48 = dma.hbm_to_vmem [thread:$0]  %s2, 16, %s46, [#allocation6]
    $region13: #{tpu_custom_call.1} parent=1 // pred_fallthru
      _
    // Predicated region
    $region14: #{tpu_custom_call.1} parent=1 // pred_check
      _
    $region15: #{tpu_custom_call.1} parent=1 // pred_check_branch
      %50 = sbr.rel (0) target = $region17
    $region16: #{tpu_custom_call.1} parent=1 // pred_region
      %s52 = ssub.s32 512, 512
      %53 = vsyncadd [#allocation9], %s52
      %s54 = sshll.u32 [#allocation8], 4
      %s55 = int_to_ptr.vmem [resolvable:$true] %s54
      %60 = dma.hbm_to_vmem [thread:$0]  %s3, 512, %s55, [#allocation9], 128, 128, 8
    $region17: #{tpu_custom_call.1} parent=1 // pred_fallthru
      _
    // Predicated region
    $region18: #{tpu_custom_call.1} parent=1 // pred_check
      _
    $region19: #{tpu_custom_call.1} parent=1 // pred_check_branch
      %62 = sbr.rel (0) target = $region21
    $region20: #{tpu_custom_call.1} parent=1 // pred_region
      %s64 = ssub.s32 16, 16
      %65 = vsyncadd [#allocation9], %s64
      %s67 = sshll.u32 [#allocation10], 4
      %s68 = int_to_ptr.vmem [resolvable:$true] %s67
      %70 = dma.hbm_to_vmem [thread:$0]  %s4, 16, %s68, [#allocation9]
    $region21: #{tpu_custom_call.1} parent=1 // pred_fallthru
      _
    // Predicated region
    $region22: #{tpu_custom_call.1} parent=1 // pred_check
      _
    $region23: #{tpu_custom_call.1} parent=1 // pred_check_branch
      %72 = sbr.rel (0) target = $region25
    $region24: #{tpu_custom_call.1} parent=1 // pred_region
      %s74 = ssub.s32 1024, 1024
      %75 = vsyncadd [#allocation12], %s74
      %s76 = sshll.u32 [#allocation11], 4
      %s77 = int_to_ptr.vmem [resolvable:$true] %s76
      %82 = dma.hbm_to_vmem [thread:$0]  %s5, 1024, %s77, [#allocation12], 128, 128, 8
    $region25: #{tpu_custom_call.1} parent=1 // pred_fallthru
      _
    // Predicated region
    $region26: #{tpu_custom_call.1} parent=1 // pred_check
      _
    $region27: #{tpu_custom_call.1} parent=1 // pred_check_branch
      %84 = sbr.rel (0) target = $region29
    $region28: #{tpu_custom_call.1} parent=1 // pred_region
      %s86 = ssub.s32 16, 16
      %87 = vsyncadd [#allocation12], %s86
      %s89 = sshll.u32 [#allocation13], 4
      %s90 = int_to_ptr.vmem [resolvable:$true] %s89
      %92 = dma.hbm_to_vmem [thread:$0]  %s6, 16, %s90, [#allocation12]
    $region29: #{tpu_custom_call.1} parent=1 // pred_fallthru
      _
    // Predicated region
    $region30: #{tpu_custom_call.1} parent=1 // pred_check
      _
    $region31: #{tpu_custom_call.1} parent=1 // pred_check_branch
      %94 = sbr.rel (0) target = $region33
    $region32: #{tpu_custom_call.1} parent=1 // pred_region
      %95 = dma.done [#allocation3], 256
    $region33: #{tpu_custom_call.1} parent=1 // pred_fallthru
      _
    // Predicated region
    $region34: #{tpu_custom_call.1} parent=1 // pred_check
      _
    $region35: #{tpu_custom_call.1} parent=1 // pred_check_branch
      %97 = sbr.rel (0) target = $region37
    $region36: #{tpu_custom_call.1} parent=1 // pred_region
      %98 = dma.done [#allocation6], 16
    $region37: #{tpu_custom_call.1} parent=1 // pred_fallthru
      _
    // Predicated region
    $region38: #{tpu_custom_call.1} parent=1 // pred_check
      _
    $region39: #{tpu_custom_call.1} parent=1 // pred_check_branch
      %100 = sbr.rel (0) target = $region41
    $region40: #{tpu_custom_call.1} parent=1 // pred_region
      %101 = dma.done [#allocation6], 16
    $region41: #{tpu_custom_call.1} parent=1 // pred_fallthru
      _
    // Predicated region
    $region42: #{tpu_custom_call.1} parent=1 // pred_check
      _
    $region43: #{tpu_custom_call.1} parent=1 // pred_check_branch
      %103 = sbr.rel (0) target = $region45
    $region44: #{tpu_custom_call.1} parent=1 // pred_region
      %104 = dma.done [#allocation9], 512
    $region45: #{tpu_custom_call.1} parent=1 // pred_fallthru
      _
    // Predicated region
    $region46: #{tpu_custom_call.1} parent=1 // pred_check
      _
    $region47: #{tpu_custom_call.1} parent=1 // pred_check_branch
      %106 = sbr.rel (0) target = $region49
    $region48: #{tpu_custom_call.1} parent=1 // pred_region
      %107 = dma.done [#allocation9], 16
    $region49: #{tpu_custom_call.1} parent=1 // pred_fallthru
      _
    // Predicated region
    $region50: #{tpu_custom_call.1} parent=1 // pred_check
      _
    $region51: #{tpu_custom_call.1} parent=1 // pred_check_branch
      %109 = sbr.rel (0) target = $region53
    $region52: #{tpu_custom_call.1} parent=1 // pred_region
      %110 = dma.done [#allocation12], 1024
    $region53: #{tpu_custom_call.1} parent=1 // pred_fallthru
      _
    // Predicated region
    $region54: #{tpu_custom_call.1} parent=1 // pred_check
      _
    $region55: #{tpu_custom_call.1} parent=1 // pred_check_branch
      %112 = sbr.rel (0) target = $region57
    $region56: #{tpu_custom_call.1} parent=1 // pred_region
      %113 = dma.done [#allocation12], 16
    $region57: #{tpu_custom_call.1} parent=1 // pred_fallthru
      _
    %v114 = vld [vmem:[#allocation2] sm:$0xff]
    %v115 = vld [vmem:[#allocation2 + $0x8] sm:$0xff]
    %vm116 = vcmask 261120
    %v117 = vsel %vm116, %v114, 0.0
    %118 = vadd.xlane.f32.xlu0 %v117
    %v119 = vpop.xlane.xlu0 %118
    %v120 = vsel %vm116, %v115, 0.0
    %121 = vadd.xlane.f32.xlu0 %v120
    %v122 = vpop.xlane.xlu0 %121
    %v123 = vrcp.pop 32.0
    %v124 = vmul.f32 %v119, %v123
    %v125 = vmul.f32 %v122, %v123
    %v126 = vsub.f32 %v114, %v124
    %v127 = vsub.f32 %v115, %v125
    %v128 = vmul.f32 %v126, %v126
    %v129 = vmul.f32 %v127, %v127
    %v130 = vsel %vm116, %v128, 0.0
    %131 = vadd.xlane.f32.xlu0 %v130
    %v132 = vpop.xlane.xlu0 %131
    %v133 = vsel %vm116, %v129, 0.0
    %134 = vadd.xlane.f32.xlu0 %v133
    %v135 = vpop.xlane.xlu0 %134
    %v136 = vmul.f32 %v132, %v123
    %v137 = vmul.f32 %v135, %v123
    %v138 = vadd.f32 %v136, 1e-05
    %v139 = vadd.f32 %v137, 1e-05
    %v140 = vrsqrt.pop %v138
    %v141 = vrsqrt.pop %v139
    %v142 = vmul.f32 %v126, %v140
    %v143 = vmul.f32 %v127, %v141
    %v144 = vld [vmem:[#allocation5] sm:$0x1]
    %v146 = vlaneseq
    %v147 = vshrl.u32 %v146, 7
    %v148 = vsub.s32 0, %v147
    %v149 = vrot.slane %v144, %v148
    %v151 = vmul.f32 %v142, %v149
    %v152 = vmul.f32 %v143, %v149
    %v153 = vld [vmem:[#allocation7] sm:$0x1]
    %v155 = vlaneseq
    %v156 = vshrl.u32 %v155, 7
    %v157 = vsub.s32 0, %v156
    %v158 = vrot.slane %v153, %v157
    %v160 = vadd.f32 %v151, %v158
    %v161 = vadd.f32 %v152, %v158
    %v162 = vld [vmem:[#allocation8] sm:$0xff]
    %v163 = vld [vmem:[#allocation8 + $0x8] sm:$0xff]
    %v164 = vld [vmem:[#allocation8 + $0x10] sm:$0xff]
    %v165 = vld [vmem:[#allocation8 + $0x18] sm:$0xff]
    %v166 = vld [vmem:[#allocation10] sm:$0x1]
    %v168 = vlaneseq
    %v169 = vshrl.u32 %v168, 7
    %v170 = vsub.s32 0, %v169
    %v171 = vrot.slane %v166, %v170
    %v174 = vsel %vm116, %v160, 0
    %v177 = vsel %vm116, %v161, 0
    %179 = vmatprep.subr.mxu0 0.0
    %180 = vmatpush1.msra.mxu0 %v162
    %181 = vmatprep.subr.mxu0 0.0
    %182 = vmatpush1.msra.mxu0 %v163
    %183 = vmatprep.subr.mxu0 0.0
    %184 = vmatpush1.msra.mxu0 %v164
    %185 = vmatprep.subr.mxu0 0.0
    %186 = vmatpush1.msra.mxu0 %v165
    %187 = vmatprep.subr.mxu0 0.0
    %188 = vmatpush1.msra.mxu0 0.0
    %189 = vmatprep.subr.mxu0 0.0
    %190 = vmatpush1.msra.mxu0 0.0
    %191 = vmatprep.subr.mxu0 0.0
    %192 = vmatpush1.msra.mxu0 0.0
    %193 = vmatprep.subr.mxu0 0.0
    %194 = vmatpush1.msra.mxu0 0.0
    %195 = vmatprep.subr.mxu0 0.0
    %196 = vmatpush1.msra.mxu0 0.0
    %197 = vmatprep.subr.mxu0 0.0
    %198 = vmatpush1.msra.mxu0 0.0
    %199 = vmatprep.subr.mxu0 0.0
    %200 = vmatpush1.msra.mxu0 0.0
    %201 = vmatprep.subr.mxu0 0.0
    %202 = vmatpush1.msra.mxu0 0.0
    %203 = vmatprep.subr.mxu0 0.0
    %204 = vmatpush1.msra.mxu0 0.0
    %205 = vmatprep.subr.mxu0 0.0
    %206 = vmatpush1.msra.mxu0 0.0
    %207 = vmatprep.subr.mxu0 0.0
    %208 = vmatpush1.msra.mxu0 0.0
    %209 = vmatprep.subr.mxu0 0.0
    %210 = vmatpush1.msra.mxu0 0.0
    %211 = vmatprep.subr.mxu0 0.0
    %212 = vmatpush1.msra.mxu0 0.0
    %213 = vmatprep.subr.mxu0 0.0
    %214 = vmatpush1.msra.mxu0 0.0
    %215 = vmatprep.subr.mxu0 0.0
    %216 = vmatpush1.msra.mxu0 0.0
    %217 = vmatprep.subr.mxu0 0.0
    %218 = vmatpush1.msra.mxu0 0.0
    %219 = vmatprep.subr.mxu0 0.0
    %220 = vmatpush1.msra.mxu0 0.0
    %221 = vmatprep.subr.mxu0 0.0
    %222 = vmatpush1.msra.mxu0 0.0
    %223 = vmatprep.subr.mxu0 0.0
    %224 = vmatpush1.msra.mxu0 0.0
    %225 = vmatprep.subr.mxu0 0.0
    %226 = vmatpush1.msra.mxu0 0.0
    %227 = vmatprep.subr.mxu0 0.0
    %228 = vmatpush1.msra.mxu0 0.0
    %229 = vmatprep.subr.mxu0 0.0
    %230 = vmatpush1.msra.mxu0 0.0
    %231 = vmatprep.subr.mxu0 0.0
    %232 = vmatpush1.msra.mxu0 0.0
    %233 = vmatprep.subr.mxu0 0.0
    %234 = vmatpush1.msra.mxu0 0.0
    %235 = vmatprep.subr.mxu0 0.0
    %236 = vmatpush1.msra.mxu0 0.0
    %237 = vmatprep.subr.mxu0 0.0
    %238 = vmatpush1.msra.mxu0 0.0
    %239 = vmatprep.subr.mxu0 0.0
    %240 = vmatpush1.msra.mxu0 0.0
    %241 = vmatprep.subr.mxu0 0.0
    %242 = vmatpush1.msra.mxu0 0.0
    %243 = vmatprep.mubr.f32.mxu0 0.0
    %244 = vmatmul.mubr.f32.gmra.mrb[0].mxu0 %v174
    %v245 = vpop.f32.mrb[0].mxu0
    %v246 = vadd.f32 %v171, %v245
    %v247 = vpop.f32.mrb[0].mxu0
    %248 = vmatprep.mubr.f32.mxu0 0.0
    %249 = vmatmul.mubr.f32.gmra.mrb[0].mxu0 %v177
    %v250 = vpop.f32.mrb[0].mxu0
    %v251 = vadd.f32 %v171, %v250
    %v252 = vpop.f32.mrb[0].mxu0
    %253 = vdwg.mxu0
    %v254 = vmul.f32 %v246, %v246
    %v255 = vmul.f32 %v251, %v251
    %v256 = vmul.f32 %v246, %v254
    %v257 = vmul.f32 %v251, %v255
    %v258 = vmul.f32 %v256, 0.044715
    %v259 = vmul.f32 %v257, 0.044715
    %v260 = vadd.f32 %v246, %v258
    %v261 = vadd.f32 %v251, %v259
    %v262 = vmul.f32 %v260, 0.7978846
    %v263 = vmul.f32 %v261, 0.7978846
    %v264 = vtanh.pop %v262
    %v265 = vtanh.pop %v263
    %v266 = vadd.f32 %v264, 1.0
    %v267 = vadd.f32 %v265, 1.0
    %v268 = vmul.f32 %v266, 0.5
    %v269 = vmul.f32 %v267, 0.5
    %v270 = vmul.f32 %v246, %v268
    %v271 = vmul.f32 %v251, %v269
    %v272 = vld [vmem:[#allocation11] sm:$0xff]
    %v273 = vld [vmem:[#allocation11 + $0x8] sm:$0xff]
    %v274 = vld [vmem:[#allocation11 + $0x10] sm:$0xff]
    %v275 = vld [vmem:[#allocation11 + $0x18] sm:$0xff]
    %v276 = vld [vmem:[#allocation11 + $0x20] sm:$0xff]
    %v277 = vld [vmem:[#allocation11 + $0x28] sm:$0xff]
    %v278 = vld [vmem:[#allocation11 + $0x30] sm:$0xff]
    %v279 = vld [vmem:[#allocation11 + $0x38] sm:$0xff]
    %v280 = vld [vmem:[#allocation13] sm:$0x1]
    %v282 = vlaneseq
    %v283 = vshrl.u32 %v282, 7
    %v284 = vsub.s32 0, %v283
    %v285 = vrot.slane %v280, %v284
    %vm287 = vcmask 523264
    %v289 = vsel %vm287, %v270, 0
    %v292 = vsel %vm287, %v271, 0
    %294 = vmatprep.subr.mxu0 0.0
    %295 = vmatpush1.msra.mxu0 %v272
    %296 = vmatprep.subr.mxu0 0.0
    %297 = vmatpush1.msra.mxu0 %v273
    %298 = vmatprep.subr.mxu0 0.0
    %299 = vmatpush1.msra.mxu0 %v274
    %300 = vmatprep.subr.mxu0 0.0
    %301 = vmatpush1.msra.mxu0 %v275
    %302 = vmatprep.subr.mxu0 0.0
    %303 = vmatpush1.msra.mxu0 %v276
    %304 = vmatprep.subr.mxu0 0.0
    %305 = vmatpush1.msra.mxu0 %v277
    %306 = vmatprep.subr.mxu0 0.0
    %307 = vmatpush1.msra.mxu0 %v278
    %308 = vmatprep.subr.mxu0 0.0
    %309 = vmatpush1.msra.mxu0 %v279
    %310 = vmatprep.subr.mxu0 0.0
    %311 = vmatpush1.msra.mxu0 0.0
    %312 = vmatprep.subr.mxu0 0.0
    %313 = vmatpush1.msra.mxu0 0.0
    %314 = vmatprep.subr.mxu0 0.0
    %315 = vmatpush1.msra.mxu0 0.0
    %316 = vmatprep.subr.mxu0 0.0
    %317 = vmatpush1.msra.mxu0 0.0
    %318 = vmatprep.subr.mxu0 0.0
    %319 = vmatpush1.msra.mxu0 0.0
    %320 = vmatprep.subr.mxu0 0.0
    %321 = vmatpush1.msra.mxu0 0.0
    %322 = vmatprep.subr.mxu0 0.0
    %323 = vmatpush1.msra.mxu0 0.0
    %324 = vmatprep.subr.mxu0 0.0
    %325 = vmatpush1.msra.mxu0 0.0
    %326 = vmatprep.subr.mxu0 0.0
    %327 = vmatpush1.msra.mxu0 0.0
    %328 = vmatprep.subr.mxu0 0.0
    %329 = vmatpush1.msra.mxu0 0.0
    %330 = vmatprep.subr.mxu0 0.0
    %331 = vmatpush1.msra.mxu0 0.0
    %332 = vmatprep.subr.mxu0 0.0
    %333 = vmatpush1.msra.mxu0 0.0
    %334 = vmatprep.subr.mxu0 0.0
    %335 = vmatpush1.msra.mxu0 0.0
    %336 = vmatprep.subr.mxu0 0.0
    %337 = vmatpush1.msra.mxu0 0.0
    %338 = vmatprep.subr.mxu0 0.0
    %339 = vmatpush1.msra.mxu0 0.0
    %340 = vmatprep.subr.mxu0 0.0
    %341 = vmatpush1.msra.mxu0 0.0
    %342 = vmatprep.subr.mxu0 0.0
    %343 = vmatpush1.msra.mxu0 0.0
    %344 = vmatprep.subr.mxu0 0.0
    %345 = vmatpush1.msra.mxu0 0.0
    %346 = vmatprep.subr.mxu0 0.0
    %347 = vmatpush1.msra.mxu0 0.0
    %348 = vmatprep.subr.mxu0 0.0
    %349 = vmatpush1.msra.mxu0 0.0
    %350 = vmatprep.subr.mxu0 0.0
    %351 = vmatpush1.msra.mxu0 0.0
    %352 = vmatprep.subr.mxu0 0.0
    %353 = vmatpush1.msra.mxu0 0.0
    %354 = vmatprep.subr.mxu0 0.0
    %355 = vmatpush1.msra.mxu0 0.0
    %356 = vmatprep.subr.mxu0 0.0
    %357 = vmatpush1.msra.mxu0 0.0
    %358 = vmatprep.mubr.f32.mxu0 0.0
    %359 = vmatmul.mubr.f32.gmra.mrb[0].mxu0 %v289
    %v360 = vpop.f32.mrb[0].mxu0
    %v361 = vadd.f32 %v285, %v360
    %v362 = vpop.f32.mrb[0].mxu0
    %363 = vmatprep.mubr.f32.mxu0 0.0
    %364 = vmatmul.mubr.f32.gmra.mrb[0].mxu0 %v292
    %v365 = vpop.f32.mrb[0].mxu0
    %v366 = vadd.f32 %v285, %v365
    %v367 = vpop.f32.mrb[0].mxu0
    %368 = vdwg.mxu0
    %369 = vst.msk [vmem:[#allocation14] sm:$0xff] %vm116, %v361
    %370 = vst.msk [vmem:[#allocation14 + $0x8] sm:$0xff] %vm116, %v366
    // Predicated region
    $region58: #{tpu_custom_call.1} parent=1 // pred_check
      _
    $region59: #{tpu_custom_call.1} parent=1 // pred_check_branch
      %372 = sbr.rel (0) target = $region61
    $region60: #{tpu_custom_call.1} parent=1 // pred_region
      %s374 = ssub.s32 256, 256
      %375 = vsyncadd [#allocation4], %s374
      %s376 = sshll.u32 [#allocation14], 4
      %s377 = int_to_ptr.vmem [resolvable:$true] %s376
      %382 = dma.vmem_to_hbm [thread:$0]  %s377, 256, %s7, [#allocation4], 128, 128, 8
    $region61: #{tpu_custom_call.1} parent=1 // pred_fallthru
      _
    // Predicated region
    $region62: #{tpu_custom_call.1} parent=1 // pred_check
      _
    $region63: #{tpu_custom_call.1} parent=1 // pred_check_branch
      %384 = sbr.rel (0) target = $region65
    $region64: #{tpu_custom_call.1} parent=1 // pred_region
      %385 = dma.done [#allocation4], 256
    $region65: #{tpu_custom_call.1} parent=1 // pred_fallthru
      _
    %386 = vsyncpa [#allocation3], 1
    %387 = vsyncpa [#allocation6], 1
    %388 = vsyncpa [#allocation9], 1
    %389 = vsyncpa [#allocation12], 1
    %390 = vsyncpa [#allocation4], 1

</llo_original>
